<compile_context>
chip_gen: v6e
topology: v6e:2x2x1
jax: 0.10.0
libtpu: 0.0.40
codegen_flags: <defaults>
</compile_context>

<pallas_src>
import math
from functools import partial

import jax
import jax.numpy as jnp
import numpy as np
from jax.experimental import pallas as pl
from jax.experimental.pallas import tpu as pltpu


S = 12  # the module hard-codes a 12-long aggregation axis


def _grey_local_kernel(x_ref, colsum_ref, rowsum_ref, group_ref, out_ref, m_ref,
                       *, inv_batch):
    # x_ref:      (12, B*N)  x[b, n, k] laid out as x_t[k, b*N + n]  (lane-dense)
    # colsum_ref: (12, N)    colsum(Ar)[n, k] stored as [k, n]
    # rowsum_ref: (12, B*N)  rowsum(Ar_inv)[n, j] tiled over batch as [j, b*N + n]
    # group_ref:  (B*N, N)   one-hot grouping matrix: group[b*N + n, n'] = (n == n')
    x = x_ref[...]

    # total[n] = (1/B) * sum_{b,k} colsum(Ar)[n,k] * x[b,n,k]
    #   batch-group sum via one MXU matmul, k-sum via a cheap sublane reduce.
    xsum = jnp.dot(x, group_ref[...], preferred_element_type=jnp.float32)       # (12, N)
    total = jnp.sum(xsum * colsum_ref[...], axis=0, keepdims=True) * inv_batch  # (1, N)

    # M = (total < 5) * 5 + |total|   (assigned to odeFunc.M in the reference)
    m_ref[...] = jnp.where(total < 5.0, 5.0, 0.0) + jnp.abs(total)

    # TODO(synk): odeint(viscoelastic(...)) dynamics are not defined in the provided
    # source; placeholder keeps the constant-in-time solution y(t) = y(0) with
    # y(0) = inputs[:, 0, :, -1:], so
    #   out[b,n,j] = sum_k Ar_inv[n,j,k] * x[b,n,11] = x[b,n,11] * rowsum(Ar_inv)[n,j]
    x_last = x[S - 1:S, :]                                   # (1, B*N)
    out_ref[...] = x_last * rowsum_ref[...]                  # (12, B*N), dense VPU mul


def build_cal(aggregator):
    """cal[n, j] = cal_aggregate_element(r_n, j) = prod(arange(14)[:j-1] + r_n) / j!.
    Row j (>=1) of Ar[n] carries this value in all strictly-lower columns."""
    r = aggregator[:, 0].astype(jnp.float32)                 # (N,)
    nn = jnp.arange(0, 14, dtype=jnp.float32)
    cols = [jnp.zeros_like(r)]                               # j = 0 (never used)
    for j in range(1, S):
        if j == 1:
            top = jnp.ones_like(r)                           # prod over empty slice = 1
        else:
            top = jnp.prod(nn[None, : j - 1] + r[:, None], axis=1)
        cols.append(top / float(math.factorial(j)))
    return jnp.stack(cols, axis=1)                           # (N, 12)


def colsum_Ar(cal):
    """colsum(Ar)[n, k] = 1 + sum_{j > k} cal[n, j]  (Ar = I + row-constant strict lower)."""
    tail = jnp.cumsum(cal[:, ::-1], axis=1)[:, ::-1]         # sum_{j >= k} cal[n, j]
    return 1.0 + tail - cal                                  # (N, 12)


def rowsum_Ar_inv(cal):
    """rowsum(Ar^{-1})[n, :] = y solving Ar[n] y = 1, via forward substitution on the
    unit lower-triangular Ar (cheaper / better conditioned than a general inverse)."""
    y0 = jnp.ones(cal.shape[:1], jnp.float32)
    ys = [y0]
    run = y0                                                 # sum_{k < j} y_k
    for j in range(1, S):
        yj = 1.0 - cal[:, j] * run
        ys.append(yj)
        run = run + yj
    return jnp.stack(ys, axis=1)                             # (N, 12)


@jax.jit
def grey_local_forward(inputs, aggregator):
    """inputs: (B, C, N, 12) float32; aggregator: (N, 1) float32 (the nn.Parameter).
    Returns (out, M) matching grey_local.forward's return value and odeFunc.M."""
    B, _, N, s = inputs.shape
    assert s == S, "grey_local hard-codes a 12-long aggregation axis"

    x = inputs[:, 0, :, :].astype(jnp.float32)               # (B, N, 12)
    # Lane-dense layout for the kernel: (12, B*N), lane index l = b*N + n.
    x_t = jnp.transpose(x, (2, 0, 1)).reshape(S, B * N)

    cal = build_cal(aggregator)                              # (N, 12)
    colsum_t = colsum_Ar(cal).T                              # (12, N)
    rowsum = rowsum_Ar_inv(cal)                              # (N, 12)
    rowsum_t = jnp.broadcast_to(rowsum.T[:, None, :], (S, B, N)).reshape(S, B * N)
    group = jnp.tile(jnp.eye(N, dtype=jnp.float32), (B, 1))  # (B*N, N)

    out_t, m = pl.pallas_call(
        partial(_grey_local_kernel, inv_batch=1.0 / B),
        out_shape=(
            jax.ShapeDtypeStruct((S, B * N), jnp.float32),   # forward() output (transposed)
            jax.ShapeDtypeStruct((1, N), jnp.float32),       # odeFunc.M (side effect)
        ),
        in_specs=[pl.BlockSpec(memory_space=pltpu.MemorySpace.VMEM)] * 4,
        out_specs=(
            pl.BlockSpec(memory_space=pltpu.MemorySpace.VMEM),
            pl.BlockSpec(memory_space=pltpu.MemorySpace.VMEM),
        ),
    )(x_t, colsum_t, rowsum_t, group)

    out = jnp.transpose(out_t.reshape(S, B, N), (1, 2, 0))   # (B, N, 12)
    M = m.reshape(N, 1)                                      # match torch (node, 1)
    return out, M


def _reference_numpy(inputs, aggregator):
    """Float64 numpy reference with the same placeholder ODE semantics."""
    x = np.asarray(inputs, dtype=np.float64)[:, 0]           # (B, N, 12)
    r = np.asarray(aggregator, dtype=np.float64)[:, 0]       # (N,)
    B, N, _ = x.shape
    nn = np.arange(0, 14, dtype=np.float64)
    Ar = np.tile(np.eye(S), (N, 1, 1))
    for n in range(N):
        for j in range(1, S):
            Ar[n, j, :j] = np.prod(nn[: j - 1] + r[n]) / math.factorial(j)
    Ar_inv = np.linalg.inv(Ar)
    xr = np.einsum('njk,bnk->bnj', Ar, x)
    total = xr.sum(axis=(0, 2)) / B                          # (N,)
    M = np.where(total < 5.0, 5.0, 0.0) + np.abs(total)
    ode_seq = np.broadcast_to(x[:, :, -1:], x.shape)
    out = np.einsum('njk,bnk->bnj', Ar_inv, ode_seq)
    return out, M.reshape(N, 1), total.reshape(N, 1)


if __name__ == "__main__":
    key = jax.random.PRNGKey(0)
    k_in, k_agg = jax.random.split(key)

    # Batch is hard-coded to 64 in the reference (Ar.repeat(64, ...)); node/channel kept small.
    B, C, N = 64, 2, 8
    inputs = jax.random.normal(k_in, (B, C, N, S), dtype=jnp.float32)
    aggregator = jax.random.normal(k_agg, (N, 1), dtype=jnp.float32)  # torch.randn(node, 1)

    out, M = grey_local_forward(inputs, aggregator)
    jax.block_until_ready((out, M))
    assert out.shape == (B, N, S) and M.shape == (N, 1)

    # Sanity check against a float64 numpy reference (same placeholder ODE semantics).
    out_ref, M_ref, total_ref = _reference_numpy(inputs, aggregator)
    np.testing.assert_allclose(np.asarray(out), out_ref, rtol=1e-3, atol=1e-3)
    m_diff = np.abs(np.asarray(M) - M_ref)
    near_threshold = np.abs(total_ref - 5.0) < 0.05          # mask flip allowed at the boundary
    assert np.all((m_diff < 0.1 + 1e-2 * np.abs(M_ref)) | near_threshold)

    print("KERNEL_OK")
</pallas_src>

<mosaic_0001>
module attributes {stable_mosaic.version = 11 : i64} {
  func.func @_grey_local_kernel(%arg0: memref<12x512xf32, #tpu.memory_space<vmem>>, %arg1: memref<12x8xf32, #tpu.memory_space<vmem>>, %arg2: memref<12x512xf32, #tpu.memory_space<vmem>>, %arg3: memref<512x8xf32, #tpu.memory_space<vmem>>, %arg4: memref<12x512xf32, #tpu.memory_space<vmem>>, %arg5: memref<1x8xf32, #tpu.memory_space<vmem>>) attributes {dimension_semantics = [], scalar_prefetch = 0 : i64, scratch_operands = 0 : i64, tpu.core_type = #tpu.core_type<tc>} {
    %c0 = arith.constant 0 : index
    %c0_0 = arith.constant 0 : index
    %0 = vector.load %arg0[%c0, %c0_0] : memref<12x512xf32, #tpu.memory_space<vmem>>, vector<12x512xf32>
    %c0_1 = arith.constant 0 : index
    %c0_2 = arith.constant 0 : index
    %1 = vector.load %arg3[%c0_1, %c0_2] : memref<512x8xf32, #tpu.memory_space<vmem>>, vector<512x8xf32>
    %cst = arith.constant dense<0.000000e+00> : vector<12x8xf32>
    %2 = tpu.matmul %0, %1, %cst {dimension_numbers = #tpu.dot_dimension_numbers<[1], [0], [0], [1], [0, 0, 1, 1], [], []>} : vector<12x512xf32>, vector<512x8xf32>, vector<12x8xf32> -> vector<12x8xf32>
    %c0_3 = arith.constant 0 : index
    %c0_4 = arith.constant 0 : index
    %3 = vector.load %arg1[%c0_3, %c0_4] : memref<12x8xf32, #tpu.memory_space<vmem>>, vector<12x8xf32>
    %4 = arith.mulf %2, %3 : vector<12x8xf32>
    %cst_5 = arith.constant dense<0.000000e+00> : vector<8xf32>
    %5 = vector.multi_reduction <add>, %4, %cst_5 [0] : vector<12x8xf32> to vector<8xf32>
    %6 = vector.shape_cast %5 : vector<8xf32> to vector<1x8xf32>
    %cst_6 = arith.constant 1.562500e-02 : f32
    %7 = vector.broadcast %cst_6 : f32 to vector<1x8xf32>
    %8 = arith.mulf %6, %7 : vector<1x8xf32>
    %cst_7 = arith.constant 5.000000e+00 : f32
    %9 = vector.broadcast %cst_7 : f32 to vector<1x8xf32>
    %10 = arith.cmpf olt, %8, %9 : vector<1x8xf32>
    %cst_8 = arith.constant 5.000000e+00 : f32
    %cst_9 = arith.constant 0.000000e+00 : f32
    %11 = vector.broadcast %cst_8 : f32 to vector<1x8xf32>
    %12 = vector.broadcast %cst_9 : f32 to vector<1x8xf32>
    %13 = arith.select %10, %11, %12 : vector<1x8xi1>, vector<1x8xf32>
    %14 = math.absf %8 : vector<1x8xf32>
    %15 = arith.addf %13, %14 : vector<1x8xf32>
    %c0_10 = arith.constant 0 : index
    %c0_11 = arith.constant 0 : index
    %16 = vector.load %arg5[%c0_10, %c0_11] : memref<1x8xf32, #tpu.memory_space<vmem>>, vector<1x8xf32>
    tpu.vector_store %arg5[%c0_10, %c0_11], %15 {strides = array<i32>} : memref<1x8xf32, #tpu.memory_space<vmem>>, vector<1x8xf32>,
    %17 = vector.extract_strided_slice %0 {offsets = [11, 0], sizes = [1, 512], strides = [1, 1]} : vector<12x512xf32> to vector<1x512xf32>
    %c0_12 = arith.constant 0 : index
    %c0_13 = arith.constant 0 : index
    %18 = vector.load %arg2[%c0_12, %c0_13] : memref<12x512xf32, #tpu.memory_space<vmem>>, vector<12x512xf32>
    %19 = vector.broadcast %17 : vector<1x512xf32> to vector<12x512xf32>
    %20 = arith.mulf %19, %18 : vector<12x512xf32>
    %c0_14 = arith.constant 0 : index
    %c0_15 = arith.constant 0 : index
    %21 = vector.load %arg4[%c0_14, %c0_15] : memref<12x512xf32, #tpu.memory_space<vmem>>, vector<12x512xf32>
    tpu.vector_store %arg4[%c0_14, %c0_15], %20 {strides = array<i32>} : memref<12x512xf32, #tpu.memory_space<vmem>>, vector<12x512xf32>,
    return
  }
}

</mosaic_0001>

<llo_original>
// kernel: grey_local_forward.1
$region0: #{grey_local_forward.1}
  #allocation0 [shape = 'u32[]', space=smem, size = 0x4, offset = 0x4, fixed_abs, tag = 'smem constant byte address 0x4 - core index']
  #allocation1 [shape = 'u32[144,128]{1,0:T(1,128)}', space=vmem, size = 0x12000, scoped, tag = 'internal scratch']
  %s0 = inlined_call_operand.vmem [shape: f32[12,512], index: 0, kind: input, shape index: {}]
  %s1 = inlined_call_operand.vmem [shape: f32[12,8], index: 1, kind: input, shape index: {}]
  %s2 = inlined_call_operand.vmem [shape: f32[12,512], index: 2, kind: input, shape index: {}]
  %s3 = inlined_call_operand.vmem [shape: f32[512,8], index: 3, kind: input, shape index: {}]
  %s4 = inlined_call_operand.vmem [shape: f32[12,512], index: 4, kind: output, shape index: {0}]
  %s5 = inlined_call_operand.hbm [shape: f32[1,8], index: 5, kind: output, shape index: {1}]
  %6 = xla_tuple %s4, %s5
  %s7 = sld [smem:[#allocation0]]
  $region34: #{grey_local_forward.1} parent=0
    _
  %s9 = ssub.s32 1, %s7
  %s10 = scalar_select 0, %s9, %s7
  $region1: #{grey_local_forward.1} parent=0
    #allocation2 [shape = 'u8[512]{0}', space=vmem, size = 0x400, scoped, tag = 'output window, operand 1, single buffered']
    #allocation3 [shape = 's32[1]{0}', space=sflag, size = 0x4, scoped, tag = 'scoped memory for grey_local_forward.1']
    %11 = vsyncpa [#allocation3], 0
    // Predicated region
    $region2: #{grey_local_forward.1} parent=1 // pred_check
      _
    $region3: #{grey_local_forward.1} parent=1 // pred_check_branch
      %13 = sbr.rel (0) target = $region5
    $region4: #{grey_local_forward.1} parent=1 // pred_region
      _
    $region5: #{grey_local_forward.1} parent=1 // pred_fallthru
      _
    // Predicated region
    $region6: #{grey_local_forward.1} parent=1 // pred_check
      _
    $region7: #{grey_local_forward.1} parent=1 // pred_check_branch
      %15 = sbr.rel (0) target = $region9
    $region8: #{grey_local_forward.1} parent=1 // pred_region
      _
    $region9: #{grey_local_forward.1} parent=1 // pred_fallthru
      _
    // Predicated region
    $region10: #{grey_local_forward.1} parent=1 // pred_check
      _
    $region11: #{grey_local_forward.1} parent=1 // pred_check_branch
      %17 = sbr.rel (0) target = $region13
    $region12: #{grey_local_forward.1} parent=1 // pred_region
      _
    $region13: #{grey_local_forward.1} parent=1 // pred_fallthru
      _
    // Predicated region
    $region14: #{grey_local_forward.1} parent=1 // pred_check
      _
    $region15: #{grey_local_forward.1} parent=1 // pred_check_branch
      %19 = sbr.rel (0) target = $region17
    $region16: #{grey_local_forward.1} parent=1 // pred_region
      _
    $region17: #{grey_local_forward.1} parent=1 // pred_fallthru
      _
    %v20 = vld [vmem:[%s0] sm:$0xff]
    %v21 = vld [vmem:[%s0 + $0x8] sm:$0xff]
    %v22 = vld [vmem:[%s0 + $0x10] sm:$0xff]
    %v23 = vld [vmem:[%s0 + $0x18] sm:$0xff]
    %v24 = vld [vmem:[%s0 + $0x20] sm:$0xf]
    %v25 = vld [vmem:[%s0 + $0x28] sm:$0xf]
    %v26 = vld [vmem:[%s0 + $0x30] sm:$0xf]
    %v27 = vld [vmem:[%s0 + $0x38] sm:$0xf]
    %v28 = vld [vmem:[%s3] sm:$0xff]
    %v29 = vld [vmem:[%s3 + $0x8] sm:$0xff]
    %v30 = vld [vmem:[%s3 + $0x10] sm:$0xff]
    %v31 = vld [vmem:[%s3 + $0x18] sm:$0xff]
    %v32 = vld [vmem:[%s3 + $0x20] sm:$0xff]
    %v33 = vld [vmem:[%s3 + $0x28] sm:$0xff]
    %v34 = vld [vmem:[%s3 + $0x30] sm:$0xff]
    %v35 = vld [vmem:[%s3 + $0x38] sm:$0xff]
    %v36 = vld [vmem:[%s3 + $0x40] sm:$0xff]
    %v37 = vld [vmem:[%s3 + $0x48] sm:$0xff]
    %v38 = vld [vmem:[%s3 + $0x50] sm:$0xff]
    %v39 = vld [vmem:[%s3 + $0x58] sm:$0xff]
    %v40 = vld [vmem:[%s3 + $0x60] sm:$0xff]
    %v41 = vld [vmem:[%s3 + $0x68] sm:$0xff]
    %v42 = vld [vmem:[%s3 + $0x70] sm:$0xff]
    %v43 = vld [vmem:[%s3 + $0x78] sm:$0xff]
    %v44 = vld [vmem:[%s3 + $0x80] sm:$0xff]
    %v45 = vld [vmem:[%s3 + $0x88] sm:$0xff]
    %v46 = vld [vmem:[%s3 + $0x90] sm:$0xff]
    %v47 = vld [vmem:[%s3 + $0x98] sm:$0xff]
    %v48 = vld [vmem:[%s3 + $0xa0] sm:$0xff]
    %v49 = vld [vmem:[%s3 + $0xa8] sm:$0xff]
    %v50 = vld [vmem:[%s3 + $0xb0] sm:$0xff]
    %v51 = vld [vmem:[%s3 + $0xb8] sm:$0xff]
    %v52 = vld [vmem:[%s3 + $0xc0] sm:$0xff]
    %v53 = vld [vmem:[%s3 + $0xc8] sm:$0xff]
    %v54 = vld [vmem:[%s3 + $0xd0] sm:$0xff]
    %v55 = vld [vmem:[%s3 + $0xd8] sm:$0xff]
    %v56 = vld [vmem:[%s3 + $0xe0] sm:$0xff]
    %v57 = vld [vmem:[%s3 + $0xe8] sm:$0xff]
    %v58 = vld [vmem:[%s3 + $0xf0] sm:$0xff]
    %v59 = vld [vmem:[%s3 + $0xf8] sm:$0xff]
    %v60 = vld [vmem:[%s3 + $0x100] sm:$0xff]
    %v61 = vld [vmem:[%s3 + $0x108] sm:$0xff]
    %v62 = vld [vmem:[%s3 + $0x110] sm:$0xff]
    %v63 = vld [vmem:[%s3 + $0x118] sm:$0xff]
    %v64 = vld [vmem:[%s3 + $0x120] sm:$0xff]
    %v65 = vld [vmem:[%s3 + $0x128] sm:$0xff]
    %v66 = vld [vmem:[%s3 + $0x130] sm:$0xff]
    %v67 = vld [vmem:[%s3 + $0x138] sm:$0xff]
    %v68 = vld [vmem:[%s3 + $0x140] sm:$0xff]
    %v69 = vld [vmem:[%s3 + $0x148] sm:$0xff]
    %v70 = vld [vmem:[%s3 + $0x150] sm:$0xff]
    %v71 = vld [vmem:[%s3 + $0x158] sm:$0xff]
    %v72 = vld [vmem:[%s3 + $0x160] sm:$0xff]
    %v73 = vld [vmem:[%s3 + $0x168] sm:$0xff]
    %v74 = vld [vmem:[%s3 + $0x170] sm:$0xff]
    %v75 = vld [vmem:[%s3 + $0x178] sm:$0xff]
    %v76 = vld [vmem:[%s3 + $0x180] sm:$0xff]
    %v77 = vld [vmem:[%s3 + $0x188] sm:$0xff]
    %v78 = vld [vmem:[%s3 + $0x190] sm:$0xff]
    %v79 = vld [vmem:[%s3 + $0x198] sm:$0xff]
    %v80 = vld [vmem:[%s3 + $0x1a0] sm:$0xff]
    %v81 = vld [vmem:[%s3 + $0x1a8] sm:$0xff]
    %v82 = vld [vmem:[%s3 + $0x1b0] sm:$0xff]
    %v83 = vld [vmem:[%s3 + $0x1b8] sm:$0xff]
    %v84 = vld [vmem:[%s3 + $0x1c0] sm:$0xff]
    %v85 = vld [vmem:[%s3 + $0x1c8] sm:$0xff]
    %v86 = vld [vmem:[%s3 + $0x1d0] sm:$0xff]
    %v87 = vld [vmem:[%s3 + $0x1d8] sm:$0xff]
    %v88 = vld [vmem:[%s3 + $0x1e0] sm:$0xff]
    %v89 = vld [vmem:[%s3 + $0x1e8] sm:$0xff]
    %v90 = vld [vmem:[%s3 + $0x1f0] sm:$0xff]
    %v91 = vld [vmem:[%s3 + $0x1f8] sm:$0xff]
    %92 = vmatprep.subr.mxu0 0.0
    %93 = vmatpush1.msra.mxu0 %v43
    %94 = vmatprep.subr.mxu0 0.0
    %95 = vmatpush1.msra.mxu0 %v42
    %96 = vmatprep.subr.mxu0 0.0
    %97 = vmatpush1.msra.mxu0 %v41
    %98 = vmatprep.subr.mxu0 0.0
    %99 = vmatpush1.msra.mxu0 %v40
    %100 = vmatprep.subr.mxu0 0.0
    %101 = vmatpush1.msra.mxu0 %v39
    %102 = vmatprep.subr.mxu0 0.0
    %103 = vmatpush1.msra.mxu0 %v38
    %104 = vmatprep.subr.mxu0 0.0
    %105 = vmatpush1.msra.mxu0 %v37
    %106 = vmatprep.subr.mxu0 0.0
    %107 = vmatpush1.msra.mxu0 %v36
    %108 = vmatprep.subr.mxu0 0.0
    %109 = vmatpush1.msra.mxu0 %v35
    %110 = vmatprep.subr.mxu0 0.0
    %111 = vmatpush1.msra.mxu0 %v34
    %112 = vmatprep.subr.mxu0 0.0
    %113 = vmatpush1.msra.mxu0 %v33
    %114 = vmatprep.subr.mxu0 0.0
    %115 = vmatpush1.msra.mxu0 %v32
    %116 = vmatprep.subr.mxu0 0.0
    %117 = vmatpush1.msra.mxu0 %v31
    %118 = vmatprep.subr.mxu0 0.0
    %119 = vmatpush1.msra.mxu0 %v30
    %120 = vmatprep.subr.mxu0 0.0
    %121 = vmatpush1.msra.mxu0 %v29
    %122 = vmatprep.subr.mxu0 0.0
    %123 = vmatpush1.msra.mxu0 %v28
    %124 = vmatprep.subr.mxu0 0.0
    %125 = vmatpush2.msra.mxu0 %v59
    %126 = vmatprep.subr.mxu0 0.0
    %127 = vmatpush2.msra.mxu0 %v58
    %128 = vmatprep.subr.mxu0 0.0
    %129 = vmatpush2.msra.mxu0 %v57
    %130 = vmatprep.subr.mxu0 0.0
    %131 = vmatpush2.msra.mxu0 %v56
    %132 = vmatprep.subr.mxu0 0.0
    %133 = vmatpush2.msra.mxu0 %v55
    %134 = vmatprep.subr.mxu0 0.0
    %135 = vmatpush2.msra.mxu0 %v54
    %136 = vmatprep.subr.mxu0 0.0
    %137 = vmatpush2.msra.mxu0 %v53
    %138 = vmatprep.subr.mxu0 0.0
    %139 = vmatpush2.msra.mxu0 %v52
    %140 = vmatprep.subr.mxu0 0.0
    %141 = vmatpush2.msra.mxu0 %v51
    %142 = vmatprep.subr.mxu0 0.0
    %143 = vmatpush2.msra.mxu0 %v50
    %144 = vmatprep.subr.mxu0 0.0
    %145 = vmatpush2.msra.mxu0 %v49
    %146 = vmatprep.subr.mxu0 0.0
    %147 = vmatpush2.msra.mxu0 %v48
    %148 = vmatprep.subr.mxu0 0.0
    %149 = vmatpush2.msra.mxu0 %v47
    %150 = vmatprep.subr.mxu0 0.0
    %151 = vmatpush2.msra.mxu0 %v46
    %152 = vmatprep.subr.mxu0 0.0
    %153 = vmatpush2.msra.mxu0 %v45
    %154 = vmatprep.subr.mxu0 0.0
    %155 = vmatpush2.msra.mxu0 %v44
    %156 = vmatprep.mubr.f32.mxu0 %v21
    %157 = vmatmul.mubr.f32.gmra.mxu0 %v20
    %v158 = vpop.f32.mrf.mxu0
    %v159 = vadd.f32 0.0, %v158
    %v160 = vpop.f32.mrf.mxu0
    %161 = vmatprep.mubr.f32.mxu0 %v25
    %162 = vmatmul.mubr.f32.gmra.mxu0 %v24
    %v163 = vpop.f32.mrf.mxu0
    %v164 = vadd.f32 0.0, %v163
    %v165 = vpop.f32.mrf.mxu0
    %166 = vdwg.mxu0
    %167 = vmatprep.subr.mxu0 0.0
    %168 = vmatpush1.msra.mxu0 %v75
    %169 = vmatprep.subr.mxu0 0.0
    %170 = vmatpush1.msra.mxu0 %v74
    %171 = vmatprep.subr.mxu0 0.0
    %172 = vmatpush1.msra.mxu0 %v73
    %173 = vmatprep.subr.mxu0 0.0
    %174 = vmatpush1.msra.mxu0 %v72
    %175 = vmatprep.subr.mxu0 0.0
    %176 = vmatpush1.msra.mxu0 %v71
    %177 = vmatprep.subr.mxu0 0.0
    %178 = vmatpush1.msra.mxu0 %v70
    %179 = vmatprep.subr.mxu0 0.0
    %180 = vmatpush1.msra.mxu0 %v69
    %181 = vmatprep.subr.mxu0 0.0
    %182 = vmatpush1.msra.mxu0 %v68
    %183 = vmatprep.subr.mxu0 0.0
    %184 = vmatpush1.msra.mxu0 %v67
    %185 = vmatprep.subr.mxu0 0.0
    %186 = vmatpush1.msra.mxu0 %v66
    %187 = vmatprep.subr.mxu0 0.0
    %188 = vmatpush1.msra.mxu0 %v65
    %189 = vmatprep.subr.mxu0 0.0
    %190 = vmatpush1.msra.mxu0 %v64
    %191 = vmatprep.subr.mxu0 0.0
    %192 = vmatpush1.msra.mxu0 %v63
    %193 = vmatprep.subr.mxu0 0.0
    %194 = vmatpush1.msra.mxu0 %v62
    %195 = vmatprep.subr.mxu0 0.0
    %196 = vmatpush1.msra.mxu0 %v61
    %197 = vmatprep.subr.mxu0 0.0
    %198 = vmatpush1.msra.mxu0 %v60
    %199 = vmatprep.subr.mxu0 0.0
    %200 = vmatpush2.msra.mxu0 %v91
    %201 = vmatprep.subr.mxu0 0.0
    %202 = vmatpush2.msra.mxu0 %v90
    %203 = vmatprep.subr.mxu0 0.0
    %204 = vmatpush2.msra.mxu0 %v89
    %205 = vmatprep.subr.mxu0 0.0
    %206 = vmatpush2.msra.mxu0 %v88
    %207 = vmatprep.subr.mxu0 0.0
    %208 = vmatpush2.msra.mxu0 %v87
    %209 = vmatprep.subr.mxu0 0.0
    %210 = vmatpush2.msra.mxu0 %v86
    %211 = vmatprep.subr.mxu0 0.0
    %212 = vmatpush2.msra.mxu0 %v85
    %213 = vmatprep.subr.mxu0 0.0
    %214 = vmatpush2.msra.mxu0 %v84
    %215 = vmatprep.subr.mxu0 0.0
    %216 = vmatpush2.msra.mxu0 %v83
    %217 = vmatprep.subr.mxu0 0.0
    %218 = vmatpush2.msra.mxu0 %v82
    %219 = vmatprep.subr.mxu0 0.0
    %220 = vmatpush2.msra.mxu0 %v81
    %221 = vmatprep.subr.mxu0 0.0
    %222 = vmatpush2.msra.mxu0 %v80
    %223 = vmatprep.subr.mxu0 0.0
    %224 = vmatpush2.msra.mxu0 %v79
    %225 = vmatprep.subr.mxu0 0.0
    %226 = vmatpush2.msra.mxu0 %v78
    %227 = vmatprep.subr.mxu0 0.0
    %228 = vmatpush2.msra.mxu0 %v77
    %229 = vmatprep.subr.mxu0 0.0
    %230 = vmatpush2.msra.mxu0 %v76
    %231 = vmatprep.mubr.f32.mxu0 %v23
    %232 = vmatmul.mubr.f32.gmra.mxu0 %v22
    %v233 = vpop.f32.mrf.mxu0
    %v234 = vadd.f32 %v159, %v233
    %v235 = vpop.f32.mrf.mxu0
    %236 = vmatprep.mubr.f32.mxu0 %v27
    %237 = vmatmul.mubr.f32.gmra.mxu0 %v26
    %v238 = vpop.f32.mrf.mxu0
    %v239 = vadd.f32 %v164, %v238
    %v240 = vpop.f32.mrf.mxu0
    %241 = vdwg.mxu0
    %v242 = vld [vmem:[%s1] sm:$0xff]
    %v243 = vld [vmem:[%s1 + $0x8] sm:$0xf]
    %v244 = vmul.f32 %v234, %v242
    %v245 = vmul.f32 %v239, %v243
    %vm246 = vcmask 64512
    %v247 = vsel %vm246, %v244, 0.0
    %vm248 = vcmask 60416
    %v249 = vsel %vm248, %v245, 0.0
    %v250 = vadd.f32 %v247, %v249
    %v251 = vrot.slane %v250, 4
    %v252 = vadd.f32 %v250, %v251
    %v253 = vrot.slane %v252, 2
    %v254 = vadd.f32 %v252, %v253
    %v255 = vrot.slane %v254, 1
    %v256 = vadd.f32 %v254, %v255
    %v257 = vmul.f32 %v256, 0.015625
    %vm258 = vcmp.lt.f32.partialorder %v257, 5.0
    %v259 = vsel %vm258, 5.0, 0.0
    %v260 = vand.u32 2147483647, %v257
    %v261 = vadd.f32 %v259, %v260
    %vm262 = vcmask 57344
    %263 = vst.msk [vmem:[#allocation2] sm:$0x1] %vm262, %v261
    %v264 = vld [vmem:[%s2] sm:$0xff]
    %v265 = vld [vmem:[%s2 + $0x8] sm:$0xff]
    %v266 = vld [vmem:[%s2 + $0x10] sm:$0xff]
    %v267 = vld [vmem:[%s2 + $0x18] sm:$0xff]
    %v268 = vld [vmem:[%s2 + $0x20] sm:$0xf]
    %v269 = vld [vmem:[%s2 + $0x28] sm:$0xf]
    %v270 = vld [vmem:[%s2 + $0x30] sm:$0xf]
    %v271 = vld [vmem:[%s2 + $0x38] sm:$0xf]
    %v272 = vlaneseq
    %v273 = vshrl.u32 %v272, 7
    %v274 = vsub.s32 3, %v273
    %v275 = vrot.slane %v24, %v274
    %v276 = vlaneseq
    %v277 = vshrl.u32 %v276, 7
    %v278 = vsub.s32 3, %v277
    %v279 = vrot.slane %v25, %v278
    %v280 = vlaneseq
    %v281 = vshrl.u32 %v280, 7
    %v282 = vsub.s32 3, %v281
    %v283 = vrot.slane %v26, %v282
    %v284 = vlaneseq
    %v285 = vshrl.u32 %v284, 7
    %v286 = vsub.s32 3, %v285
    %v287 = vrot.slane %v27, %v286
    %v288 = vmul.f32 %v275, %v264
    %v289 = vmul.f32 %v279, %v265
    %v290 = vmul.f32 %v283, %v266
    %v291 = vmul.f32 %v287, %v267
    %v292 = vmul.f32 %v275, %v268
    %v293 = vmul.f32 %v279, %v269
    %v294 = vmul.f32 %v283, %v270
    %v295 = vmul.f32 %v287, %v271
    %296 = vst [vmem:[%s4] sm:$0xff] %v288
    %297 = vst [vmem:[%s4 + $0x8] sm:$0xff] %v289
    %298 = vst [vmem:[%s4 + $0x10] sm:$0xff] %v290
    %299 = vst [vmem:[%s4 + $0x18] sm:$0xff] %v291
    %300 = vst [vmem:[%s4 + $0x20] sm:$0xf] %v292
    %301 = vst [vmem:[%s4 + $0x28] sm:$0xf] %v293
    %302 = vst [vmem:[%s4 + $0x30] sm:$0xf] %v294
    %303 = vst [vmem:[%s4 + $0x38] sm:$0xf] %v295
    // Predicated region
    $region18: #{grey_local_forward.1} parent=1 // pred_check
      _
    $region19: #{grey_local_forward.1} parent=1 // pred_check_branch
      %305 = sbr.rel (0) target = $region21
    $region20: #{grey_local_forward.1} parent=1 // pred_region
      _
    $region21: #{grey_local_forward.1} parent=1 // pred_fallthru
      _
    // Predicated region
    $region22: #{grey_local_forward.1} parent=1 // pred_check
      _
    $region23: #{grey_local_forward.1} parent=1 // pred_check_branch
      %307 = sbr.rel (0) target = $region25
    $region24: #{grey_local_forward.1} parent=1 // pred_region
      %s309 = ssub.s32 16, 16
      %310 = vsyncadd [#allocation3], %s309
      %s312 = sshll.u32 [#allocation2], 4
      %s313 = int_to_ptr.vmem [resolvable:$true] %s312
      %315 = dma.vmem_to_hbm [thread:$0]  %s313, 16, %s5, [#allocation3]
    $region25: #{grey_local_forward.1} parent=1 // pred_fallthru
      _
    // Predicated region
    $region26: #{grey_local_forward.1} parent=1 // pred_check
      _
    $region27: #{grey_local_forward.1} parent=1 // pred_check_branch
      %317 = sbr.rel (0) target = $region29
    $region28: #{grey_local_forward.1} parent=1 // pred_region
      _
    $region29: #{grey_local_forward.1} parent=1 // pred_fallthru
      _
    // Predicated region
    $region30: #{grey_local_forward.1} parent=1 // pred_check
      _
    $region31: #{grey_local_forward.1} parent=1 // pred_check_branch
      %319 = sbr.rel (0) target = $region33
    $region32: #{grey_local_forward.1} parent=1 // pred_region
      %320 = dma.done [#allocation3], 16
    $region33: #{grey_local_forward.1} parent=1 // pred_fallthru
      _
    %321 = vsyncpa [#allocation3], 1

</llo_original>
